<compile_context>
chip_gen: v6e
topology: v6e:2x2x1
jax: 0.10.0
libtpu: 0.0.40
codegen_flags: <defaults>
</compile_context>

<pallas_src>
import functools

import jax
import jax.numpy as jnp
from jax.experimental import pallas as pl
from jax.experimental.pallas import tpu as pltpu

NEURAL_NUMS = 50          # logical hidden width (PyTorch `neural_nums`)
H_PAD = 128               # lane-dense padded hidden width
DROPOUT_P = 0.5
LANE = 128
SUBLANE = 8


def _round_up(n: int, m: int) -> int:
    return ((n + m - 1) // m) * m


# ----------------------------------------------------------------------------
# Kernels
# ----------------------------------------------------------------------------
def _actor_train_kernel(x_ref, m1_ref, m2_ref,
                        w1_ref, b1_ref, w2_ref, b2_ref, w3_ref, b3_ref,
                        o_ref):
    x = x_ref[...]

    # fc1 -> dropout -> relu   (mask already holds 0 or 1/(1-p))
    h1 = jnp.dot(x, w1_ref[...], preferred_element_type=jnp.float32)
    h1 = jnp.maximum((h1 + b1_ref[...]) * m1_ref[...], 0.0)

    # fc2 -> dropout -> relu
    h2 = jnp.dot(h1, w2_ref[...], preferred_element_type=jnp.float32)
    h2 = jnp.maximum((h2 + b2_ref[...]) * m2_ref[...], 0.0)

    # out -> tanh
    o = jnp.dot(h2, w3_ref[...], preferred_element_type=jnp.float32)
    o_ref[...] = jnp.tanh(o + b3_ref[...])


def _actor_eval_kernel(x_ref,
                       w1_ref, b1_ref, w2_ref, b2_ref, w3_ref, b3_ref,
                       o_ref):
    x = x_ref[...]
    h1 = jnp.dot(x, w1_ref[...], preferred_element_type=jnp.float32)
    h1 = jnp.maximum(h1 + b1_ref[...], 0.0)
    h2 = jnp.dot(h1, w2_ref[...], preferred_element_type=jnp.float32)
    h2 = jnp.maximum(h2 + b2_ref[...], 0.0)
    o = jnp.dot(h2, w3_ref[...], preferred_element_type=jnp.float32)
    o_ref[...] = jnp.tanh(o + b3_ref[...])


# ----------------------------------------------------------------------------
# Wrapper
# ----------------------------------------------------------------------------
@functools.partial(jax.jit, static_argnames=("action_numbers", "train"))
def actor_forward(x, params, key, *, action_numbers, train=True):
    """Fused Actor forward.

    x:      (B, feature_numbers) float32
    params: padded params from init_actor_params (hidden/out dims lane-dense)
    key:    jax PRNG key used for the dropout masks when train=True
    """
    B, F = x.shape
    A_pad = params["w3"].shape[1]

    # Batch tile: big enough to amortize per-step overhead, sublane aligned.
    TB = 256 if B >= 256 else _round_up(max(B, SUBLANE), SUBLANE)
    B_pad = _round_up(B, TB)
    if B_pad != B:
        x = jnp.pad(x, ((0, B_pad - B), (0, 0)))

    grid = (pl.cdiv(B_pad, TB),)

    x_spec = pl.BlockSpec((TB, F), lambda i: (i, 0))
    m_spec = pl.BlockSpec((TB, H_PAD), lambda i: (i, 0))
    o_spec = pl.BlockSpec((TB, A_pad), lambda i: (i, 0))
    # Weights / biases: same block every grid step -> stay VMEM-resident.
    w1_spec = pl.BlockSpec((F, H_PAD), lambda i: (0, 0))
    w2_spec = pl.BlockSpec((H_PAD, H_PAD), lambda i: (0, 0))
    w3_spec = pl.BlockSpec((H_PAD, A_pad), lambda i: (0, 0))
    bh_spec = pl.BlockSpec((1, H_PAD), lambda i: (0, 0))
    ba_spec = pl.BlockSpec((1, A_pad), lambda i: (0, 0))

    compiler_params = pltpu.CompilerParams(
        dimension_semantics=("parallel",))

    weight_args = (params["w1"], params["b1"],
                   params["w2"], params["b2"],
                   params["w3"], params["b3"])
    weight_specs = [w1_spec, bh_spec, w2_spec, bh_spec, w3_spec, ba_spec]

    if train:
        # TODO(synk): dropout randomness is generated host-side with
        # jax.random (pltpu.prng_* has no interpret-mode lowering); masks are
        # passed in as lane-dense (B_pad, 128) scale arrays.
        k1, k2 = jax.random.split(key)
        scale = 1.0 / (1.0 - DROPOUT_P)
        m1 = jax.random.bernoulli(
            k1, 1.0 - DROPOUT_P, (B_pad, H_PAD)).astype(jnp.float32) * scale
        m2 = jax.random.bernoulli(
            k2, 1.0 - DROPOUT_P, (B_pad, H_PAD)).astype(jnp.float32) * scale

        out = pl.pallas_call(
            _actor_train_kernel,
            out_shape=jax.ShapeDtypeStruct((B_pad, A_pad), jnp.float32),
            grid=grid,
            in_specs=[x_spec, m_spec, m_spec] + weight_specs,
            out_specs=o_spec,
            compiler_params=compiler_params,
        )(x, m1, m2, *weight_args)
    else:
        out = pl.pallas_call(
            _actor_eval_kernel,
            out_shape=jax.ShapeDtypeStruct((B_pad, A_pad), jnp.float32),
            grid=grid,
            in_specs=[x_spec] + weight_specs,
            out_specs=o_spec,
            compiler_params=compiler_params,
        )(x, *weight_args)

    return out[:B, :action_numbers]


# ----------------------------------------------------------------------------
# Params
# ----------------------------------------------------------------------------
def init_actor_params(key, feature_numbers, action_numbers):
    """PyTorch nn.Linear default init (U(-1/sqrt(fan_in), 1/sqrt(fan_in)))
    at the logical sizes, then zero-padded so hidden/output dims are
    lane-dense (multiples of 128).  Weights stored as (in, out)."""
    def linear(k, fan_in, fan_out, in_pad, out_pad):
        kw, kb = jax.random.split(k)
        bound = 1.0 / jnp.sqrt(jnp.float32(fan_in))
        w = jax.random.uniform(kw, (fan_in, fan_out), jnp.float32, -bound, bound)
        b = jax.random.uniform(kb, (1, fan_out), jnp.float32, -bound, bound)
        w = jnp.pad(w, ((0, in_pad - fan_in), (0, out_pad - fan_out)))
        b = jnp.pad(b, ((0, 0), (0, out_pad - fan_out)))
        return w, b

    A_pad = _round_up(action_numbers, LANE)
    k1, k2, k3 = jax.random.split(key, 3)
    w1, b1 = linear(k1, feature_numbers, NEURAL_NUMS, feature_numbers, H_PAD)
    w2, b2 = linear(k2, NEURAL_NUMS, NEURAL_NUMS, H_PAD, H_PAD)
    w3, b3 = linear(k3, NEURAL_NUMS, action_numbers, H_PAD, A_pad)
    return {"w1": w1, "b1": b1, "w2": w2, "b2": b2, "w3": w3, "b3": b3}


# ----------------------------------------------------------------------------
# Demo / self-check
# ----------------------------------------------------------------------------
if __name__ == "__main__":
    feature_numbers = 16
    action_numbers = 4
    batch = 8

    key = jax.random.PRNGKey(0)
    kp, kx, kd = jax.random.split(key, 3)

    params = init_actor_params(kp, feature_numbers, action_numbers)
    x = jax.random.normal(kx, (batch, feature_numbers), dtype=jnp.float32)

    # Training-mode forward (dropout active; mask derived from `kd`).
    out_train = jax.block_until_ready(
        actor_forward(x, params, kd, action_numbers=action_numbers, train=True))

    # Eval-mode forward (dropout is identity), cross-checked vs pure JAX.
    out_eval = jax.block_until_ready(
        actor_forward(x, params, kd, action_numbers=action_numbers, train=False))

    ref = jnp.tanh(
        jnp.maximum(
            jnp.maximum(x @ params["w1"] + params["b1"], 0.0) @ params["w2"]
            + params["b2"], 0.0
        ) @ params["w3"] + params["b3"]
    )[:, :action_numbers]

    assert out_train.shape == (batch, action_numbers)
    assert out_eval.shape == (batch, action_numbers)
    assert jnp.allclose(out_eval, ref, atol=1e-5), "eval-mode mismatch vs JAX ref"
    assert bool(jnp.all(jnp.abs(out_train) <= 1.0)), "tanh range violated"

    print("KERNEL_OK")
</pallas_src>

<mosaic_0001>
module attributes {stable_mosaic.version = 11 : i64} {
  func.func @_actor_train_kernel(%arg0: i32, %arg1: memref<8x16xf32, #tpu.memory_space<vmem>>, %arg2: memref<8x128xf32, #tpu.memory_space<vmem>>, %arg3: memref<8x128xf32, #tpu.memory_space<vmem>>, %arg4: memref<16x128xf32, #tpu.memory_space<vmem>>, %arg5: memref<1x128xf32, #tpu.memory_space<vmem>>, %arg6: memref<128x128xf32, #tpu.memory_space<vmem>>, %arg7: memref<1x128xf32, #tpu.memory_space<vmem>>, %arg8: memref<128x128xf32, #tpu.memory_space<vmem>>, %arg9: memref<1x128xf32, #tpu.memory_space<vmem>>, %arg10: memref<8x128xf32, #tpu.memory_space<vmem>>) attributes {dimension_semantics = [#tpu.dimension_semantics<parallel>], iteration_bounds = array<i64: 1>, scalar_prefetch = 0 : i64, scratch_operands = 0 : i64, tpu.core_type = #tpu.core_type<tc>, window_params = [{transform_indices = @transform_0, window_bounds = array<i64: 8, 16>}, {transform_indices = @transform_1, window_bounds = array<i64: 8, 128>}, {transform_indices = @transform_2, window_bounds = array<i64: 8, 128>}, {pipeline_mode = #tpu.pipeline_mode<synchronous>, transform_indices = @transform_3, window_bounds = array<i64: 16, 128>}, {pipeline_mode = #tpu.pipeline_mode<synchronous>, transform_indices = @transform_4, window_bounds = array<i64: 1, 128>}, {pipeline_mode = #tpu.pipeline_mode<synchronous>, transform_indices = @transform_5, window_bounds = array<i64: 128, 128>}, {pipeline_mode = #tpu.pipeline_mode<synchronous>, transform_indices = @transform_6, window_bounds = array<i64: 1, 128>}, {pipeline_mode = #tpu.pipeline_mode<synchronous>, transform_indices = @transform_7, window_bounds = array<i64: 128, 128>}, {pipeline_mode = #tpu.pipeline_mode<synchronous>, transform_indices = @transform_8, window_bounds = array<i64: 1, 128>}, {transform_indices = @transform_9, window_bounds = array<i64: 8, 128>}]} {
    %c0 = arith.constant 0 : index
    %c0_0 = arith.constant 0 : index
    %0 = vector.load %arg1[%c0, %c0_0] : memref<8x16xf32, #tpu.memory_space<vmem>>, vector<8x16xf32>
    %c0_1 = arith.constant 0 : index
    %c0_2 = arith.constant 0 : index
    %1 = vector.load %arg4[%c0_1, %c0_2] : memref<16x128xf32, #tpu.memory_space<vmem>>, vector<16x128xf32>
    %cst = arith.constant dense<0.000000e+00> : vector<8x128xf32>
    %2 = tpu.matmul %0, %1, %cst {dimension_numbers = #tpu.dot_dimension_numbers<[1], [0], [0], [1], [0, 0, 1, 1], [], []>} : vector<8x16xf32>, vector<16x128xf32>, vector<8x128xf32> -> vector<8x128xf32>
    %c0_3 = arith.constant 0 : index
    %c0_4 = arith.constant 0 : index
    %3 = vector.load %arg5[%c0_3, %c0_4] : memref<1x128xf32, #tpu.memory_space<vmem>>, vector<1x128xf32>
    %4 = vector.broadcast %3 : vector<1x128xf32> to vector<8x128xf32>
    %5 = arith.addf %2, %4 : vector<8x128xf32>
    %c0_5 = arith.constant 0 : index
    %c0_6 = arith.constant 0 : index
    %6 = vector.load %arg2[%c0_5, %c0_6] : memref<8x128xf32, #tpu.memory_space<vmem>>, vector<8x128xf32>
    %7 = arith.mulf %5, %6 : vector<8x128xf32>
    %cst_7 = arith.constant 0.000000e+00 : f32
    %8 = vector.broadcast %cst_7 : f32 to vector<8x128xf32>
    %9 = arith.maximumf %7, %8 : vector<8x128xf32>
    %c0_8 = arith.constant 0 : index
    %c0_9 = arith.constant 0 : index
    %10 = vector.load %arg6[%c0_8, %c0_9] : memref<128x128xf32, #tpu.memory_space<vmem>>, vector<128x128xf32>
    %cst_10 = arith.constant dense<0.000000e+00> : vector<8x128xf32>
    %11 = tpu.matmul %9, %10, %cst_10 {dimension_numbers = #tpu.dot_dimension_numbers<[1], [0], [0], [1], [0, 0, 1, 1], [], []>} : vector<8x128xf32>, vector<128x128xf32>, vector<8x128xf32> -> vector<8x128xf32>
    %c0_11 = arith.constant 0 : index
    %c0_12 = arith.constant 0 : index
    %12 = vector.load %arg7[%c0_11, %c0_12] : memref<1x128xf32, #tpu.memory_space<vmem>>, vector<1x128xf32>
    %13 = vector.broadcast %12 : vector<1x128xf32> to vector<8x128xf32>
    %14 = arith.addf %11, %13 : vector<8x128xf32>
    %c0_13 = arith.constant 0 : index
    %c0_14 = arith.constant 0 : index
    %15 = vector.load %arg3[%c0_13, %c0_14] : memref<8x128xf32, #tpu.memory_space<vmem>>, vector<8x128xf32>
    %16 = arith.mulf %14, %15 : vector<8x128xf32>
    %cst_15 = arith.constant 0.000000e+00 : f32
    %17 = vector.broadcast %cst_15 : f32 to vector<8x128xf32>
    %18 = arith.maximumf %16, %17 : vector<8x128xf32>
    %c0_16 = arith.constant 0 : index
    %c0_17 = arith.constant 0 : index
    %19 = vector.load %arg8[%c0_16, %c0_17] : memref<128x128xf32, #tpu.memory_space<vmem>>, vector<128x128xf32>
    %cst_18 = arith.constant dense<0.000000e+00> : vector<8x128xf32>
    %20 = tpu.matmul %18, %19, %cst_18 {dimension_numbers = #tpu.dot_dimension_numbers<[1], [0], [0], [1], [0, 0, 1, 1], [], []>} : vector<8x128xf32>, vector<128x128xf32>, vector<8x128xf32> -> vector<8x128xf32>
    %c0_19 = arith.constant 0 : index
    %c0_20 = arith.constant 0 : index
    %21 = vector.load %arg9[%c0_19, %c0_20] : memref<1x128xf32, #tpu.memory_space<vmem>>, vector<1x128xf32>
    %22 = vector.broadcast %21 : vector<1x128xf32> to vector<8x128xf32>
    %23 = arith.addf %20, %22 : vector<8x128xf32>
    %24 = math.tanh %23 : vector<8x128xf32>
    %c0_21 = arith.constant 0 : index
    %c0_22 = arith.constant 0 : index
    %25 = vector.load %arg10[%c0_21, %c0_22] : memref<8x128xf32, #tpu.memory_space<vmem>>, vector<8x128xf32>
    tpu.vector_store %arg10[%c0_21, %c0_22], %24 {strides = array<i32>} : memref<8x128xf32, #tpu.memory_space<vmem>>, vector<8x128xf32>,
    return
  }
  func.func @transform_0(%arg0: i32) -> (i32, i32) {
    %c0_i32 = arith.constant 0 : i32
    %c0_i32_0 = arith.constant 0 : i32
    return %arg0, %c0_i32 : i32, i32
  }
  func.func @transform_1(%arg0: i32) -> (i32, i32) {
    %c0_i32 = arith.constant 0 : i32
    %c0_i32_0 = arith.constant 0 : i32
    return %arg0, %c0_i32 : i32, i32
  }
  func.func @transform_2(%arg0: i32) -> (i32, i32) {
    %c0_i32 = arith.constant 0 : i32
    %c0_i32_0 = arith.constant 0 : i32
    return %arg0, %c0_i32 : i32, i32
  }
  func.func @transform_3(%arg0: i32) -> (i32, i32) {
    %c0_i32 = arith.constant 0 : i32
    %c0_i32_0 = arith.constant 0 : i32
    %c0_i32_1 = arith.constant 0 : i32
    return %c0_i32, %c0_i32_0 : i32, i32
  }
  func.func @transform_4(%arg0: i32) -> (i32, i32) {
    %c0_i32 = arith.constant 0 : i32
    %c0_i32_0 = arith.constant 0 : i32
    %c0_i32_1 = arith.constant 0 : i32
    return %c0_i32, %c0_i32_0 : i32, i32
  }
  func.func @transform_5(%arg0: i32) -> (i32, i32) {
    %c0_i32 = arith.constant 0 : i32
    %c0_i32_0 = arith.constant 0 : i32
    %c0_i32_1 = arith.constant 0 : i32
    return %c0_i32, %c0_i32_0 : i32, i32
  }
  func.func @transform_6(%arg0: i32) -> (i32, i32) {
    %c0_i32 = arith.constant 0 : i32
    %c0_i32_0 = arith.constant 0 : i32
    %c0_i32_1 = arith.constant 0 : i32
    return %c0_i32, %c0_i32_0 : i32, i32
  }
  func.func @transform_7(%arg0: i32) -> (i32, i32) {
    %c0_i32 = arith.constant 0 : i32
    %c0_i32_0 = arith.constant 0 : i32
    %c0_i32_1 = arith.constant 0 : i32
    return %c0_i32, %c0_i32_0 : i32, i32
  }
  func.func @transform_8(%arg0: i32) -> (i32, i32) {
    %c0_i32 = arith.constant 0 : i32
    %c0_i32_0 = arith.constant 0 : i32
    %c0_i32_1 = arith.constant 0 : i32
    return %c0_i32, %c0_i32_0 : i32, i32
  }
  func.func @transform_9(%arg0: i32) -> (i32, i32) {
    %c0_i32 = arith.constant 0 : i32
    %c0_i32_0 = arith.constant 0 : i32
    return %arg0, %c0_i32 : i32, i32
  }
}

</mosaic_0001>

<llo_original>
// kernel: actor_forward.3
$region0: #{actor_forward.3}
  #allocation0 [shape = 'u32[]', space=smem, size = 0x4, offset = 0x4, fixed_abs, tag = 'smem constant byte address 0x4 - core index']
  #allocation1 [shape = 'u32[144,128]{1,0:T(1,128)}', space=vmem, size = 0x12000, scoped, tag = 'internal scratch']
  %s0 = inlined_call_operand.vmem [shape: f32[8,16], index: 0, kind: input, shape index: {}]
  %s1 = inlined_call_operand.vmem [shape: f32[8,128], index: 1, kind: input, shape index: {}]
  %s2 = inlined_call_operand.vmem [shape: f32[8,128], index: 2, kind: input, shape index: {}]
  %s3 = inlined_call_operand.vmem [shape: f32[16,128], index: 3, kind: input, shape index: {}]
  %s4 = inlined_call_operand.vmem [shape: f32[1,128], index: 4, kind: input, shape index: {}]
  %s5 = inlined_call_operand.hbm [shape: f32[128,128], index: 5, kind: input, shape index: {}]
  %s6 = inlined_call_operand.vmem [shape: f32[1,128], index: 6, kind: input, shape index: {}]
  %s7 = inlined_call_operand.hbm [shape: f32[128,128], index: 7, kind: input, shape index: {}]
  %s8 = inlined_call_operand.vmem [shape: f32[1,128], index: 8, kind: input, shape index: {}]
  %s9 = inlined_call_operand.vmem [shape: f32[8,128], index: 9, kind: output, shape index: {}]
  %s10 = sld [smem:[#allocation0]]
  $region54: #{actor_forward.3} parent=0
    _
  %s12 = ssub.s32 1, %s10
  %s13 = scalar_select 0, %s12, %s10
  $region1: #{actor_forward.3} parent=0
    #allocation2 [shape = 'u8[65536]{0}', space=vmem, size = 0x10000, scoped, tag = 'input window, operand 5, single buffered']
    #allocation3 [shape = 's32[1]{0}', space=sflag, size = 0x4, scoped, tag = 'scoped memory for actor_forward.3']
    #allocation4 [shape = 'u8[65536]{0}', space=vmem, size = 0x10000, scoped, tag = 'input window, operand 7, single buffered']
    #allocation5 [shape = 's32[1]{0}', space=sflag, size = 0x4, scoped, tag = 'scoped memory for actor_forward.3']
    %14 = vsyncpa [#allocation3], 0
    %15 = vsyncpa [#allocation5], 0
    // Predicated region
    $region2: #{actor_forward.3} parent=1 // pred_check
      _
    $region3: #{actor_forward.3} parent=1 // pred_check_branch
      %17 = sbr.rel (0) target = $region5
    $region4: #{actor_forward.3} parent=1 // pred_region
      _
    $region5: #{actor_forward.3} parent=1 // pred_fallthru
      _
    // Predicated region
    $region6: #{actor_forward.3} parent=1 // pred_check
      _
    $region7: #{actor_forward.3} parent=1 // pred_check_branch
      %19 = sbr.rel (0) target = $region9
    $region8: #{actor_forward.3} parent=1 // pred_region
      _
    $region9: #{actor_forward.3} parent=1 // pred_fallthru
      _
    // Predicated region
    $region10: #{actor_forward.3} parent=1 // pred_check
      _
    $region11: #{actor_forward.3} parent=1 // pred_check_branch
      %21 = sbr.rel (0) target = $region13
    $region12: #{actor_forward.3} parent=1 // pred_region
      _
    $region13: #{actor_forward.3} parent=1 // pred_fallthru
      _
    // Predicated region
    $region14: #{actor_forward.3} parent=1 // pred_check
      _
    $region15: #{actor_forward.3} parent=1 // pred_check_branch
      %23 = sbr.rel (0) target = $region17
    $region16: #{actor_forward.3} parent=1 // pred_region
      _
    $region17: #{actor_forward.3} parent=1 // pred_fallthru
      _
    // Predicated region
    $region18: #{actor_forward.3} parent=1 // pred_check
      _
    $region19: #{actor_forward.3} parent=1 // pred_check_branch
      %25 = sbr.rel (0) target = $region21
    $region20: #{actor_forward.3} parent=1 // pred_region
      _
    $region21: #{actor_forward.3} parent=1 // pred_fallthru
      _
    // Predicated region
    $region22: #{actor_forward.3} parent=1 // pred_check
      _
    $region23: #{actor_forward.3} parent=1 // pred_check_branch
      %27 = sbr.rel (0) target = $region25
    $region24: #{actor_forward.3} parent=1 // pred_region
      %s29 = ssub.s32 2048, 2048
      %30 = vsyncadd [#allocation3], %s29
      %s31 = sshll.u32 [#allocation2], 4
      %s32 = int_to_ptr.vmem [resolvable:$true] %s31
      %37 = dma.hbm_to_vmem [thread:$0]  %s5, 2048, %s32, [#allocation3], 128, 128, 8
    $region25: #{actor_forward.3} parent=1 // pred_fallthru
      _
    // Predicated region
    $region26: #{actor_forward.3} parent=1 // pred_check
      _
    $region27: #{actor_forward.3} parent=1 // pred_check_branch
      %39 = sbr.rel (0) target = $region29
    $region28: #{actor_forward.3} parent=1 // pred_region
      _
    $region29: #{actor_forward.3} parent=1 // pred_fallthru
      _
    // Predicated region
    $region30: #{actor_forward.3} parent=1 // pred_check
      _
    $region31: #{actor_forward.3} parent=1 // pred_check_branch
      %41 = sbr.rel (0) target = $region33
    $region32: #{actor_forward.3} parent=1 // pred_region
      %s43 = ssub.s32 2048, 2048
      %44 = vsyncadd [#allocation5], %s43
      %s45 = sshll.u32 [#allocation4], 4
      %s46 = int_to_ptr.vmem [resolvable:$true] %s45
      %51 = dma.hbm_to_vmem [thread:$0]  %s7, 2048, %s46, [#allocation5], 128, 128, 8
    $region33: #{actor_forward.3} parent=1 // pred_fallthru
      _
    // Predicated region
    $region34: #{actor_forward.3} parent=1 // pred_check
      _
    $region35: #{actor_forward.3} parent=1 // pred_check_branch
      %53 = sbr.rel (0) target = $region37
    $region36: #{actor_forward.3} parent=1 // pred_region
      _
    $region37: #{actor_forward.3} parent=1 // pred_fallthru
      _
    // Predicated region
    $region38: #{actor_forward.3} parent=1 // pred_check
      _
    $region39: #{actor_forward.3} parent=1 // pred_check_branch
      %55 = sbr.rel (0) target = $region41
    $region40: #{actor_forward.3} parent=1 // pred_region
      %56 = dma.done [#allocation3], 2048
    $region41: #{actor_forward.3} parent=1 // pred_fallthru
      _
    // Predicated region
    $region42: #{actor_forward.3} parent=1 // pred_check
      _
    $region43: #{actor_forward.3} parent=1 // pred_check_branch
      %58 = sbr.rel (0) target = $region45
    $region44: #{actor_forward.3} parent=1 // pred_region
      %59 = dma.done [#allocation5], 2048
    $region45: #{actor_forward.3} parent=1 // pred_fallthru
      _
    %v60 = vld [vmem:[%s0] sm:$0xff]
    %v61 = vld [vmem:[%s3] sm:$0xff]
    %v62 = vld [vmem:[%s3 + $0x8] sm:$0xff]
    %v63 = vld [vmem:[%s4] sm:$0x1]
    %v65 = vlaneseq
    %v66 = vshrl.u32 %v65, 7
    %v67 = vsub.s32 0, %v66
    %v68 = vrot.slane %v63, %v67
    %vm70 = vcmask 130048
    %v72 = vsel %vm70, %v60, 0
    %74 = vmatprep.subr.mxu0 0.0
    %75 = vmatpush1.msra.mxu0 0.0
    %76 = vmatprep.subr.mxu0 0.0
    %77 = vmatpush1.msra.mxu0 0.0
    %78 = vmatprep.subr.mxu0 0.0
    %79 = vmatpush1.msra.mxu0 0.0
    %80 = vmatprep.subr.mxu0 0.0
    %81 = vmatpush1.msra.mxu0 0.0
    %82 = vmatprep.subr.mxu0 0.0
    %83 = vmatpush1.msra.mxu0 0.0
    %84 = vmatprep.subr.mxu0 0.0
    %85 = vmatpush1.msra.mxu0 0.0
    %86 = vmatprep.subr.mxu0 0.0
    %87 = vmatpush1.msra.mxu0 0.0
    %88 = vmatprep.subr.mxu0 0.0
    %89 = vmatpush1.msra.mxu0 0.0
    %90 = vmatprep.subr.mxu0 0.0
    %91 = vmatpush1.msra.mxu0 0.0
    %92 = vmatprep.subr.mxu0 0.0
    %93 = vmatpush1.msra.mxu0 0.0
    %94 = vmatprep.subr.mxu0 0.0
    %95 = vmatpush1.msra.mxu0 0.0
    %96 = vmatprep.subr.mxu0 0.0
    %97 = vmatpush1.msra.mxu0 0.0
    %98 = vmatprep.subr.mxu0 0.0
    %99 = vmatpush1.msra.mxu0 0.0
    %100 = vmatprep.subr.mxu0 0.0
    %101 = vmatpush1.msra.mxu0 0.0
    %102 = vmatprep.subr.mxu0 0.0
    %103 = vmatpush1.msra.mxu0 %v62
    %104 = vmatprep.subr.mxu0 0.0
    %105 = vmatpush1.msra.mxu0 %v61
    %106 = vmatprep.subr.mxu0 0.0
    %107 = vmatpush2.msra.mxu0 0.0
    %108 = vmatprep.subr.mxu0 0.0
    %109 = vmatpush2.msra.mxu0 0.0
    %110 = vmatprep.subr.mxu0 0.0
    %111 = vmatpush2.msra.mxu0 0.0
    %112 = vmatprep.subr.mxu0 0.0
    %113 = vmatpush2.msra.mxu0 0.0
    %114 = vmatprep.subr.mxu0 0.0
    %115 = vmatpush2.msra.mxu0 0.0
    %116 = vmatprep.subr.mxu0 0.0
    %117 = vmatpush2.msra.mxu0 0.0
    %118 = vmatprep.subr.mxu0 0.0
    %119 = vmatpush2.msra.mxu0 0.0
    %120 = vmatprep.subr.mxu0 0.0
    %121 = vmatpush2.msra.mxu0 0.0
    %122 = vmatprep.subr.mxu0 0.0
    %123 = vmatpush2.msra.mxu0 0.0
    %124 = vmatprep.subr.mxu0 0.0
    %125 = vmatpush2.msra.mxu0 0.0
    %126 = vmatprep.subr.mxu0 0.0
    %127 = vmatpush2.msra.mxu0 0.0
    %128 = vmatprep.subr.mxu0 0.0
    %129 = vmatpush2.msra.mxu0 0.0
    %130 = vmatprep.subr.mxu0 0.0
    %131 = vmatpush2.msra.mxu0 0.0
    %132 = vmatprep.subr.mxu0 0.0
    %133 = vmatpush2.msra.mxu0 0.0
    %134 = vmatprep.subr.mxu0 0.0
    %135 = vmatpush2.msra.mxu0 0.0
    %136 = vmatprep.subr.mxu0 0.0
    %137 = vmatpush2.msra.mxu0 0.0
    %138 = vmatprep.mubr.f32.mxu0 0.0
    %139 = vmatmul.mubr.f32.gmra.mxu0 %v72
    %v140 = vpop.f32.mrf.mxu0
    %v141 = vadd.f32 %v68, %v140
    %v142 = vpop.f32.mrf.mxu0
    %143 = vdwg.mxu0
    %v144 = vld [vmem:[%s1] sm:$0xff]
    %v145 = vmul.f32 %v141, %v144
    %v146 = vmax.f32 %v145, 0.0
    %v147 = vld [vmem:[#allocation2] sm:$0xff]
    %v148 = vld [vmem:[#allocation2 + $0x8] sm:$0xff]
    %v149 = vld [vmem:[#allocation2 + $0x10] sm:$0xff]
    %v150 = vld [vmem:[#allocation2 + $0x18] sm:$0xff]
    %v151 = vld [vmem:[#allocation2 + $0x20] sm:$0xff]
    %v152 = vld [vmem:[#allocation2 + $0x28] sm:$0xff]
    %v153 = vld [vmem:[#allocation2 + $0x30] sm:$0xff]
    %v154 = vld [vmem:[#allocation2 + $0x38] sm:$0xff]
    %v155 = vld [vmem:[#allocation2 + $0x40] sm:$0xff]
    %v156 = vld [vmem:[#allocation2 + $0x48] sm:$0xff]
    %v157 = vld [vmem:[#allocation2 + $0x50] sm:$0xff]
    %v158 = vld [vmem:[#allocation2 + $0x58] sm:$0xff]
    %v159 = vld [vmem:[#allocation2 + $0x60] sm:$0xff]
    %v160 = vld [vmem:[#allocation2 + $0x68] sm:$0xff]
    %v161 = vld [vmem:[#allocation2 + $0x70] sm:$0xff]
    %v162 = vld [vmem:[#allocation2 + $0x78] sm:$0xff]
    %v163 = vld [vmem:[%s6] sm:$0x1]
    %v165 = vlaneseq
    %v166 = vshrl.u32 %v165, 7
    %v167 = vsub.s32 0, %v166
    %v168 = vrot.slane %v163, %v167
    %170 = vmatprep.subr.mxu0 0.0
    %171 = vmatpush1.msra.mxu0 %v162
    %172 = vmatprep.subr.mxu0 0.0
    %173 = vmatpush1.msra.mxu0 %v161
    %174 = vmatprep.subr.mxu0 0.0
    %175 = vmatpush1.msra.mxu0 %v160
    %176 = vmatprep.subr.mxu0 0.0
    %177 = vmatpush1.msra.mxu0 %v159
    %178 = vmatprep.subr.mxu0 0.0
    %179 = vmatpush1.msra.mxu0 %v158
    %180 = vmatprep.subr.mxu0 0.0
    %181 = vmatpush1.msra.mxu0 %v157
    %182 = vmatprep.subr.mxu0 0.0
    %183 = vmatpush1.msra.mxu0 %v156
    %184 = vmatprep.subr.mxu0 0.0
    %185 = vmatpush1.msra.mxu0 %v155
    %186 = vmatprep.subr.mxu0 0.0
    %187 = vmatpush1.msra.mxu0 %v154
    %188 = vmatprep.subr.mxu0 0.0
    %189 = vmatpush1.msra.mxu0 %v153
    %190 = vmatprep.subr.mxu0 0.0
    %191 = vmatpush1.msra.mxu0 %v152
    %192 = vmatprep.subr.mxu0 0.0
    %193 = vmatpush1.msra.mxu0 %v151
    %194 = vmatprep.subr.mxu0 0.0
    %195 = vmatpush1.msra.mxu0 %v150
    %196 = vmatprep.subr.mxu0 0.0
    %197 = vmatpush1.msra.mxu0 %v149
    %198 = vmatprep.subr.mxu0 0.0
    %199 = vmatpush1.msra.mxu0 %v148
    %200 = vmatprep.subr.mxu0 0.0
    %201 = vmatpush1.msra.mxu0 %v147
    %202 = vmatprep.subr.mxu0 0.0
    %203 = vmatpush2.msra.mxu0 0.0
    %204 = vmatprep.subr.mxu0 0.0
    %205 = vmatpush2.msra.mxu0 0.0
    %206 = vmatprep.subr.mxu0 0.0
    %207 = vmatpush2.msra.mxu0 0.0
    %208 = vmatprep.subr.mxu0 0.0
    %209 = vmatpush2.msra.mxu0 0.0
    %210 = vmatprep.subr.mxu0 0.0
    %211 = vmatpush2.msra.mxu0 0.0
    %212 = vmatprep.subr.mxu0 0.0
    %213 = vmatpush2.msra.mxu0 0.0
    %214 = vmatprep.subr.mxu0 0.0
    %215 = vmatpush2.msra.mxu0 0.0
    %216 = vmatprep.subr.mxu0 0.0
    %217 = vmatpush2.msra.mxu0 0.0
    %218 = vmatprep.subr.mxu0 0.0
    %219 = vmatpush2.msra.mxu0 0.0
    %220 = vmatprep.subr.mxu0 0.0
    %221 = vmatpush2.msra.mxu0 0.0
    %222 = vmatprep.subr.mxu0 0.0
    %223 = vmatpush2.msra.mxu0 0.0
    %224 = vmatprep.subr.mxu0 0.0
    %225 = vmatpush2.msra.mxu0 0.0
    %226 = vmatprep.subr.mxu0 0.0
    %227 = vmatpush2.msra.mxu0 0.0
    %228 = vmatprep.subr.mxu0 0.0
    %229 = vmatpush2.msra.mxu0 0.0
    %230 = vmatprep.subr.mxu0 0.0
    %231 = vmatpush2.msra.mxu0 0.0
    %232 = vmatprep.subr.mxu0 0.0
    %233 = vmatpush2.msra.mxu0 0.0
    %234 = vmatprep.mubr.f32.mxu0 0.0
    %235 = vmatmul.mubr.f32.gmra.mxu0 %v146
    %v236 = vpop.f32.mrf.mxu0
    %v237 = vadd.f32 %v168, %v236
    %v238 = vpop.f32.mrf.mxu0
    %239 = vdwg.mxu0
    %v240 = vld [vmem:[%s2] sm:$0xff]
    %v241 = vmul.f32 %v237, %v240
    %v242 = vmax.f32 %v241, 0.0
    %v243 = vld [vmem:[#allocation4] sm:$0xff]
    %v244 = vld [vmem:[#allocation4 + $0x8] sm:$0xff]
    %v245 = vld [vmem:[#allocation4 + $0x10] sm:$0xff]
    %v246 = vld [vmem:[#allocation4 + $0x18] sm:$0xff]
    %v247 = vld [vmem:[#allocation4 + $0x20] sm:$0xff]
    %v248 = vld [vmem:[#allocation4 + $0x28] sm:$0xff]
    %v249 = vld [vmem:[#allocation4 + $0x30] sm:$0xff]
    %v250 = vld [vmem:[#allocation4 + $0x38] sm:$0xff]
    %v251 = vld [vmem:[#allocation4 + $0x40] sm:$0xff]
    %v252 = vld [vmem:[#allocation4 + $0x48] sm:$0xff]
    %v253 = vld [vmem:[#allocation4 + $0x50] sm:$0xff]
    %v254 = vld [vmem:[#allocation4 + $0x58] sm:$0xff]
    %v255 = vld [vmem:[#allocation4 + $0x60] sm:$0xff]
    %v256 = vld [vmem:[#allocation4 + $0x68] sm:$0xff]
    %v257 = vld [vmem:[#allocation4 + $0x70] sm:$0xff]
    %v258 = vld [vmem:[#allocation4 + $0x78] sm:$0xff]
    %v259 = vld [vmem:[%s8] sm:$0x1]
    %v261 = vlaneseq
    %v262 = vshrl.u32 %v261, 7
    %v263 = vsub.s32 0, %v262
    %v264 = vrot.slane %v259, %v263
    %266 = vmatprep.subr.mxu0 0.0
    %267 = vmatpush1.msra.mxu0 %v258
    %268 = vmatprep.subr.mxu0 0.0
    %269 = vmatpush1.msra.mxu0 %v257
    %270 = vmatprep.subr.mxu0 0.0
    %271 = vmatpush1.msra.mxu0 %v256
    %272 = vmatprep.subr.mxu0 0.0
    %273 = vmatpush1.msra.mxu0 %v255
    %274 = vmatprep.subr.mxu0 0.0
    %275 = vmatpush1.msra.mxu0 %v254
    %276 = vmatprep.subr.mxu0 0.0
    %277 = vmatpush1.msra.mxu0 %v253
    %278 = vmatprep.subr.mxu0 0.0
    %279 = vmatpush1.msra.mxu0 %v252
    %280 = vmatprep.subr.mxu0 0.0
    %281 = vmatpush1.msra.mxu0 %v251
    %282 = vmatprep.subr.mxu0 0.0
    %283 = vmatpush1.msra.mxu0 %v250
    %284 = vmatprep.subr.mxu0 0.0
    %285 = vmatpush1.msra.mxu0 %v249
    %286 = vmatprep.subr.mxu0 0.0
    %287 = vmatpush1.msra.mxu0 %v248
    %288 = vmatprep.subr.mxu0 0.0
    %289 = vmatpush1.msra.mxu0 %v247
    %290 = vmatprep.subr.mxu0 0.0
    %291 = vmatpush1.msra.mxu0 %v246
    %292 = vmatprep.subr.mxu0 0.0
    %293 = vmatpush1.msra.mxu0 %v245
    %294 = vmatprep.subr.mxu0 0.0
    %295 = vmatpush1.msra.mxu0 %v244
    %296 = vmatprep.subr.mxu0 0.0
    %297 = vmatpush1.msra.mxu0 %v243
    %298 = vmatprep.subr.mxu0 0.0
    %299 = vmatpush2.msra.mxu0 0.0
    %300 = vmatprep.subr.mxu0 0.0
    %301 = vmatpush2.msra.mxu0 0.0
    %302 = vmatprep.subr.mxu0 0.0
    %303 = vmatpush2.msra.mxu0 0.0
    %304 = vmatprep.subr.mxu0 0.0
    %305 = vmatpush2.msra.mxu0 0.0
    %306 = vmatprep.subr.mxu0 0.0
    %307 = vmatpush2.msra.mxu0 0.0
    %308 = vmatprep.subr.mxu0 0.0
    %309 = vmatpush2.msra.mxu0 0.0
    %310 = vmatprep.subr.mxu0 0.0
    %311 = vmatpush2.msra.mxu0 0.0
    %312 = vmatprep.subr.mxu0 0.0
    %313 = vmatpush2.msra.mxu0 0.0
    %314 = vmatprep.subr.mxu0 0.0
    %315 = vmatpush2.msra.mxu0 0.0
    %316 = vmatprep.subr.mxu0 0.0
    %317 = vmatpush2.msra.mxu0 0.0
    %318 = vmatprep.subr.mxu0 0.0
    %319 = vmatpush2.msra.mxu0 0.0
    %320 = vmatprep.subr.mxu0 0.0
    %321 = vmatpush2.msra.mxu0 0.0
    %322 = vmatprep.subr.mxu0 0.0
    %323 = vmatpush2.msra.mxu0 0.0
    %324 = vmatprep.subr.mxu0 0.0
    %325 = vmatpush2.msra.mxu0 0.0
    %326 = vmatprep.subr.mxu0 0.0
    %327 = vmatpush2.msra.mxu0 0.0
    %328 = vmatprep.subr.mxu0 0.0
    %329 = vmatpush2.msra.mxu0 0.0
    %330 = vmatprep.mubr.f32.mxu0 0.0
    %331 = vmatmul.mubr.f32.gmra.mxu0 %v242
    %v332 = vpop.f32.mrf.mxu0
    %v333 = vadd.f32 %v264, %v332
    %v334 = vpop.f32.mrf.mxu0
    %335 = vdwg.mxu0
    %v336 = vtanh.pop %v333
    %337 = vst [vmem:[%s9] sm:$0xff] %v336
    // Predicated region
    $region46: #{actor_forward.3} parent=1 // pred_check
      _
    $region47: #{actor_forward.3} parent=1 // pred_check_branch
      %339 = sbr.rel (0) target = $region49
    $region48: #{actor_forward.3} parent=1 // pred_region
      _
    $region49: #{actor_forward.3} parent=1 // pred_fallthru
      _
    // Predicated region
    $region50: #{actor_forward.3} parent=1 // pred_check
      _
    $region51: #{actor_forward.3} parent=1 // pred_check_branch
      %341 = sbr.rel (0) target = $region53
    $region52: #{actor_forward.3} parent=1 // pred_region
      _
    $region53: #{actor_forward.3} parent=1 // pred_fallthru
      _
    %342 = vsyncpa [#allocation3], 1
    %343 = vsyncpa [#allocation5], 1

</llo_original>
